<compile_context>
chip_gen: v7x
topology: tpu7x:2x2x1
jax: 0.10.0
libtpu: 0.0.40
codegen_flags: <defaults>
</compile_context>

<pallas_src>
import functools

import jax
import jax.numpy as jnp
from jax.experimental import pallas as pl
from jax.experimental.pallas import tpu as pltpu


def _round_up(x, m):
    return (x + m - 1) // m * m


def _dice_bce_kernel(x_ref, t_ref, bce_ref, dice_ref, *, smooth):
    x = x_ref[...].astype(jnp.float32)   # (TC, HWp) logits
    t = t_ref[...].astype(jnp.float32)   # (TC, HWp) targets (bf16 -> f32)

    # Shared exp(-|x|): feeds both the stable BCE log term and sigmoid.
    e = jnp.exp(-jnp.abs(x))
    s = 1.0 / (1.0 + e)
    p = jnp.where(x >= 0.0, s, 1.0 - s)                  # sigmoid(x), exact
    bce = jnp.maximum(x, 0.0) - x * t + jnp.log1p(e)     # BCE-with-logits, elementwise

    # Per-channel (row) reductions over the lane-dense spatial axis.
    bce_ref[...] = jnp.sum(bce, axis=-1, keepdims=True)          # (TC, 1)
    inter = jnp.sum(p * t, axis=-1, keepdims=True)
    p_sum = jnp.sum(p, axis=-1, keepdims=True)
    t_sum = jnp.sum(t, axis=-1, keepdims=True)
    dice_ref[...] = 1.0 - (2.0 * inter + smooth) / (p_sum + t_sum + smooth)


def calc_dice_loss(inputs, targets, bce_weight=0.5, smooth=1.0):
    """inputs, targets: (N, C, H, W). Returns scalar f32 loss (same semantics
    as the PyTorch calc_dice_loss module)."""
    N, C, H, W = inputs.shape
    NC, HW = N * C, H * W

    x = inputs.reshape(NC, HW).astype(jnp.float32)
    # bf16 targets are exact for binary 0/1 masks and halve target HBM traffic.
    t = targets.reshape(NC, HW).astype(jnp.bfloat16)

    # Lane-dense spatial axis: pad H*W up to a multiple of 128.
    HWp = _round_up(HW, 128)

    # Channel tile: multiple of 8, sized so both input blocks (f32 + bf16),
    # double-buffered, stay well under the 32 MiB scoped / 64 MiB v7x VMEM.
    bytes_per_row = HWp * (4 + 2)                 # logits f32 + targets bf16
    budget = 8 * 1024 * 1024                      # single-buffer total -> ~16 MiB pipelined
    tc = (budget // bytes_per_row) // 8 * 8
    tc = max(8, min(tc, 1024, _round_up(NC, 8)))
    # TODO(synk): for very large H*W (row > ~budget) add a second grid axis over
    # the spatial dim with partial-sum accumulation instead of relying on tc=8.

    NCp = _round_up(NC, tc)
    if HWp != HW or NCp != NC:
        # Pad logits with a large negative value and targets with 0 so padded
        # elements contribute exactly 0 to BCE and dice sums (sigmoid -> 0).
        x = jnp.pad(x, ((0, NCp - NC), (0, HWp - HW)), constant_values=-1e9)
        t = jnp.pad(t, ((0, NCp - NC), (0, HWp - HW)), constant_values=0)

    num_blocks = NCp // tc
    kernel = functools.partial(_dice_bce_kernel, smooth=float(smooth))

    bce_rows, dice_rows = pl.pallas_call(
        kernel,
        out_shape=(
            jax.ShapeDtypeStruct((NCp, 1), jnp.float32),   # per-channel BCE sums
            jax.ShapeDtypeStruct((NCp, 1), jnp.float32),   # per-channel dice losses
        ),
        grid=(num_blocks,),
        in_specs=[
            pl.BlockSpec((tc, HWp), lambda i: (i, 0)),
            pl.BlockSpec((tc, HWp), lambda i: (i, 0)),
        ],
        out_specs=(
            pl.BlockSpec((tc, 1), lambda i: (i, 0)),
            pl.BlockSpec((tc, 1), lambda i: (i, 0)),
        ),
        compiler_params=pltpu.CompilerParams(
            dimension_semantics=("parallel",),
            vmem_limit_bytes=32 * 1024 * 1024,
        ),
    )(x, t)

    # Trivial final means in JAX (padded rows contribute exactly 0 to both sums).
    bce_mean = jnp.sum(bce_rows) / jnp.float32(NC * HW)
    dice_mean = jnp.sum(dice_rows) / jnp.float32(NC)
    loss = bce_mean * jnp.float32(bce_weight) + dice_mean * jnp.float32(1.0 - bce_weight)
    return loss.astype(jnp.float32)


def _reference(inputs, targets, bce_weight=0.5, smooth=1.0):
    x = inputs.astype(jnp.float32)
    t = targets.astype(jnp.float32)
    bce = jnp.mean(jnp.maximum(x, 0.0) - x * t + jnp.log1p(jnp.exp(-jnp.abs(x))))
    p = jax.nn.sigmoid(x)
    inter = jnp.sum(p * t, axis=(2, 3))
    dice = 1.0 - (2.0 * inter + smooth) / (
        jnp.sum(p, axis=(2, 3)) + jnp.sum(t, axis=(2, 3)) + smooth
    )
    return bce * bce_weight + jnp.mean(dice) * (1.0 - bce_weight)


if __name__ == "__main__":
    key = jax.random.PRNGKey(0)
    k1, k2 = jax.random.split(key)
    N, C, H, W = 2, 4, 16, 16
    inputs = jax.random.normal(k1, (N, C, H, W), dtype=jnp.float32)
    targets = (jax.random.uniform(k2, (N, C, H, W)) > 0.5).astype(jnp.float32)

    loss = calc_dice_loss(inputs, targets)
    loss = jax.block_until_ready(loss)

    ref = _reference(inputs, targets)
    assert jnp.allclose(loss, ref, rtol=1e-5, atol=1e-5), (loss, ref)
    print("KERNEL_OK")
</pallas_src>

<mosaic_0001>
module attributes {stable_mosaic.version = 11 : i64} {
  func.func @_dice_bce_kernel(%arg0: i32, %arg1: memref<8x256xf32, #tpu.memory_space<vmem>>, %arg2: memref<8x256xbf16, #tpu.memory_space<vmem>>, %arg3: memref<8x1xf32, #tpu.memory_space<vmem>>, %arg4: memref<8x1xf32, #tpu.memory_space<vmem>>) attributes {dimension_semantics = [#tpu.dimension_semantics<parallel>], iteration_bounds = array<i64: 1>, scalar_prefetch = 0 : i64, scratch_operands = 0 : i64, tpu.core_type = #tpu.core_type<tc>, window_params = [{transform_indices = @transform_0, window_bounds = array<i64: 8, 256>}, {transform_indices = @transform_1, window_bounds = array<i64: 8, 256>}, {transform_indices = @transform_2, window_bounds = array<i64: 8, 1>}, {transform_indices = @transform_3, window_bounds = array<i64: 8, 1>}]} {
    %c0 = arith.constant 0 : index
    %c0_0 = arith.constant 0 : index
    %0 = vector.load %arg1[%c0, %c0_0] : memref<8x256xf32, #tpu.memory_space<vmem>>, vector<8x256xf32>
    %c0_1 = arith.constant 0 : index
    %c0_2 = arith.constant 0 : index
    %1 = vector.load %arg2[%c0_1, %c0_2] : memref<8x256xbf16, #tpu.memory_space<vmem>>, vector<8x256xbf16>
    %2 = arith.extf %1 : vector<8x256xbf16> to vector<8x256xf32>
    %3 = math.absf %0 : vector<8x256xf32>
    %cst = arith.constant 0.000000e+00 : f32
    %4 = vector.broadcast %cst : f32 to vector<8x256xf32>
    %5 = arith.subf %4, %3 : vector<8x256xf32>
    %6 = math.exp %5 : vector<8x256xf32>
    %cst_3 = arith.constant 1.000000e+00 : f32
    %7 = vector.broadcast %cst_3 : f32 to vector<8x256xf32>
    %8 = arith.addf %7, %6 : vector<8x256xf32>
    %cst_4 = arith.constant 1.000000e+00 : f32
    %9 = vector.broadcast %cst_4 : f32 to vector<8x256xf32>
    %10 = arith.divf %9, %8 : vector<8x256xf32>
    %cst_5 = arith.constant 0.000000e+00 : f32
    %11 = vector.broadcast %cst_5 : f32 to vector<8x256xf32>
    %12 = arith.cmpf oge, %0, %11 : vector<8x256xf32>
    %cst_6 = arith.constant 1.000000e+00 : f32
    %13 = vector.broadcast %cst_6 : f32 to vector<8x256xf32>
    %14 = arith.subf %13, %10 : vector<8x256xf32>
    %15 = arith.select %12, %10, %14 : vector<8x256xi1>, vector<8x256xf32>
    %cst_7 = arith.constant 0.000000e+00 : f32
    %16 = vector.broadcast %cst_7 : f32 to vector<8x256xf32>
    %17 = arith.maximumf %0, %16 : vector<8x256xf32>
    %18 = arith.mulf %0, %2 : vector<8x256xf32>
    %19 = arith.subf %17, %18 : vector<8x256xf32>
    %20 = math.log1p %6 : vector<8x256xf32>
    %21 = arith.addf %19, %20 : vector<8x256xf32>
    %cst_8 = arith.constant dense<0.000000e+00> : vector<8xf32>
    %22 = vector.multi_reduction <add>, %21, %cst_8 [1] : vector<8x256xf32> to vector<8xf32>
    %23 = vector.shape_cast %22 : vector<8xf32> to vector<8x1xf32>
    %c0_9 = arith.constant 0 : index
    %c0_10 = arith.constant 0 : index
    %24 = vector.load %arg3[%c0_9, %c0_10] : memref<8x1xf32, #tpu.memory_space<vmem>>, vector<8x1xf32>
    tpu.vector_store %arg3[%c0_9, %c0_10], %23 {strides = array<i32>} : memref<8x1xf32, #tpu.memory_space<vmem>>, vector<8x1xf32>,
    %25 = arith.mulf %15, %2 : vector<8x256xf32>
    %cst_11 = arith.constant dense<0.000000e+00> : vector<8xf32>
    %26 = vector.multi_reduction <add>, %25, %cst_11 [1] : vector<8x256xf32> to vector<8xf32>
    %27 = vector.shape_cast %26 : vector<8xf32> to vector<8x1xf32>
    %cst_12 = arith.constant dense<0.000000e+00> : vector<8xf32>
    %28 = vector.multi_reduction <add>, %15, %cst_12 [1] : vector<8x256xf32> to vector<8xf32>
    %29 = vector.shape_cast %28 : vector<8xf32> to vector<8x1xf32>
    %cst_13 = arith.constant dense<0.000000e+00> : vector<8xf32>
    %30 = vector.multi_reduction <add>, %2, %cst_13 [1] : vector<8x256xf32> to vector<8xf32>
    %31 = vector.shape_cast %30 : vector<8xf32> to vector<8x1xf32>
    %cst_14 = arith.constant 2.000000e+00 : f32
    %32 = vector.broadcast %cst_14 : f32 to vector<8x1xf32>
    %33 = arith.mulf %32, %27 : vector<8x1xf32>
    %cst_15 = arith.constant 1.000000e+00 : f32
    %34 = vector.broadcast %cst_15 : f32 to vector<8x1xf32>
    %35 = arith.addf %33, %34 : vector<8x1xf32>
    %36 = arith.addf %29, %31 : vector<8x1xf32>
    %cst_16 = arith.constant 1.000000e+00 : f32
    %37 = vector.broadcast %cst_16 : f32 to vector<8x1xf32>
    %38 = arith.addf %36, %37 : vector<8x1xf32>
    %39 = arith.divf %35, %38 : vector<8x1xf32>
    %cst_17 = arith.constant 1.000000e+00 : f32
    %40 = vector.broadcast %cst_17 : f32 to vector<8x1xf32>
    %41 = arith.subf %40, %39 : vector<8x1xf32>
    %c0_18 = arith.constant 0 : index
    %c0_19 = arith.constant 0 : index
    %42 = vector.load %arg4[%c0_18, %c0_19] : memref<8x1xf32, #tpu.memory_space<vmem>>, vector<8x1xf32>
    tpu.vector_store %arg4[%c0_18, %c0_19], %41 {strides = array<i32>} : memref<8x1xf32, #tpu.memory_space<vmem>>, vector<8x1xf32>,
    return
  }
  func.func @transform_0(%arg0: i32) -> (i32, i32) {
    %c0_i32 = arith.constant 0 : i32
    %c0_i32_0 = arith.constant 0 : i32
    return %arg0, %c0_i32 : i32, i32
  }
  func.func @transform_1(%arg0: i32) -> (i32, i32) {
    %c0_i32 = arith.constant 0 : i32
    %c0_i32_0 = arith.constant 0 : i32
    return %arg0, %c0_i32 : i32, i32
  }
  func.func @transform_2(%arg0: i32) -> (i32, i32) {
    %c0_i32 = arith.constant 0 : i32
    %c0_i32_0 = arith.constant 0 : i32
    return %arg0, %c0_i32 : i32, i32
  }
  func.func @transform_3(%arg0: i32) -> (i32, i32) {
    %c0_i32 = arith.constant 0 : i32
    %c0_i32_0 = arith.constant 0 : i32
    return %arg0, %c0_i32 : i32, i32
  }
}

</mosaic_0001>

<llo_original>
// kernel: tpu_custom_call.1
$region0: #{tpu_custom_call.1}
  #allocation0 [shape = 'u32[]', space=smem, size = 0x4, offset = 0x4, fixed_abs, tag = 'smem constant byte address 0x4 - core index']
  #allocation1 [shape = 'u32[144,128]{1,0:T(1,128)}', space=vmem, size = 0x12000, scoped, tag = 'internal scratch']
  %s0 = inlined_call_operand.hbm [shape: f32[8,256], index: 0, kind: input, shape index: {}]
  %s1 = inlined_call_operand.hbm [shape: bf16[8,256], index: 1, kind: input, shape index: {}]
  %s2 = inlined_call_operand.vmem [shape: f32[8,1], index: 2, kind: output, shape index: {0}]
  %s3 = inlined_call_operand.vmem [shape: f32[8,1], index: 3, kind: output, shape index: {1}]
  %4 = xla_tuple %s2, %s3
  %s5 = sld [smem:[#allocation0]]
  $region34: #{tpu_custom_call.1} parent=0
    _
  %s7 = ssub.s32 1, %s5
  %s8 = scalar_select 0, %s7, %s5
  $region1: #{tpu_custom_call.1} parent=0
    #allocation2 [shape = 'u8[8192]{0}', space=vmem, size = 0x2000, scoped, tag = 'input window, operand 0, single buffered']
    #allocation3 [shape = 's32[1]{0}', space=sflag, size = 0x4, scoped, tag = 'scoped memory for tpu_custom_call.1']
    #allocation4 [shape = 'u8[4096]{0}', space=vmem, size = 0x1000, scoped, tag = 'input window, operand 1, single buffered']
    #allocation5 [shape = 's32[1]{0}', space=sflag, size = 0x4, scoped, tag = 'scoped memory for tpu_custom_call.1']
    %9 = vsyncpa [#allocation3], 0
    %10 = vsyncpa [#allocation5], 0
    // Predicated region
    $region2: #{tpu_custom_call.1} parent=1 // pred_check
      _
    $region3: #{tpu_custom_call.1} parent=1 // pred_check_branch
      %12 = sbr.rel (0) target = $region5
    $region4: #{tpu_custom_call.1} parent=1 // pred_region
      %s14 = ssub.s32 256, 256
      %15 = vsyncadd [#allocation3], %s14
      %s17 = sshll.u32 [#allocation2], 4
      %s18 = int_to_ptr.vmem [resolvable:$true] %s17
      %20 = dma.hbm_to_vmem [thread:$0]  %s0, 256, %s18, [#allocation3]
    $region5: #{tpu_custom_call.1} parent=1 // pred_fallthru
      _
    // Predicated region
    $region6: #{tpu_custom_call.1} parent=1 // pred_check
      _
    $region7: #{tpu_custom_call.1} parent=1 // pred_check_branch
      %22 = sbr.rel (0) target = $region9
    $region8: #{tpu_custom_call.1} parent=1 // pred_region
      %s24 = ssub.s32 128, 128
      %25 = vsyncadd [#allocation5], %s24
      %s27 = sshll.u32 [#allocation4], 4
      %s28 = int_to_ptr.vmem [resolvable:$true] %s27
      %30 = dma.hbm_to_vmem [thread:$0]  %s1, 128, %s28, [#allocation5]
    $region9: #{tpu_custom_call.1} parent=1 // pred_fallthru
      _
    // Predicated region
    $region10: #{tpu_custom_call.1} parent=1 // pred_check
      _
    $region11: #{tpu_custom_call.1} parent=1 // pred_check_branch
      %32 = sbr.rel (0) target = $region13
    $region12: #{tpu_custom_call.1} parent=1 // pred_region
      %33 = dma.done [#allocation3], 256
    $region13: #{tpu_custom_call.1} parent=1 // pred_fallthru
      _
    // Predicated region
    $region14: #{tpu_custom_call.1} parent=1 // pred_check
      _
    $region15: #{tpu_custom_call.1} parent=1 // pred_check_branch
      %35 = sbr.rel (0) target = $region17
    $region16: #{tpu_custom_call.1} parent=1 // pred_region
      %36 = dma.done [#allocation5], 128
    $region17: #{tpu_custom_call.1} parent=1 // pred_fallthru
      _
    %v37 = vld [vmem:[#allocation2] sm:$0xff]
    %v38 = vld [vmem:[#allocation2 + $0x8] sm:$0xff]
    %v39 = vld [vmem:[#allocation4] sm:$0xff]
    %v40 = vunpack.c.l.bf16 %v39
    %v41 = vunpack.c.h.bf16 %v39
    %v42 = vand.u32 2147483647, %v37
    %v43 = vand.u32 2147483647, %v38
    %v44 = vsub.f32 0.0, %v42
    %v45 = vsub.f32 0.0, %v43
    %v46 = vmul.f32 %v44, 1.442695
    %v47 = vpow.pop %v46
    %v48 = vmul.f32 %v45, 1.442695
    %v49 = vpow.pop %v48
    %v50 = vadd.f32 %v47, 1.0
    %v51 = vadd.f32 %v49, 1.0
    %v52 = vrcp.pop %v50
    %v53 = vmul.f32 1.0, %v52
    %v54 = vrcp.pop %v51
    %v55 = vmul.f32 1.0, %v54
    %vm56 = vcmp.ge.f32.partialorder %v37, 0.0
    %vm57 = vcmp.ge.f32.partialorder %v38, 0.0
    %v58 = vsub.f32 1.0, %v53
    %v59 = vsub.f32 1.0, %v55
    %v60 = vsel %vm56, %v53, %v58
    %v61 = vsel %vm57, %v55, %v59
    %v62 = vmax.f32 %v37, 0.0
    %v63 = vmax.f32 %v38, 0.0
    %v64 = vmul.f32 %v37, %v40
    %v65 = vmul.f32 %v38, %v41
    %v66 = vsub.f32 %v62, %v64
    %v67 = vsub.f32 %v63, %v65
    %v68 = vadd.f32 %v47, 1.0
    %v69 = vlog2.pop %v68
    %v70 = vmul.f32 %v69, 0.6931472
    %v71 = vmul.f32 -0.5, %v47
    %v72 = vadd.f32 %v71, 1.0
    %v73 = vmul.f32 %v72, %v47
    %v74 = vand.u32 2147483647, %v47
    %vm75 = vcmp.lt.f32.partialorder %v74, 0.0004427343
    %v76 = vsel %vm75, %v73, %v70
    %v77 = vadd.f32 %v49, 1.0
    %v78 = vlog2.pop %v77
    %v79 = vmul.f32 %v78, 0.6931472
    %v80 = vmul.f32 -0.5, %v49
    %v81 = vadd.f32 %v80, 1.0
    %v82 = vmul.f32 %v81, %v49
    %v83 = vand.u32 2147483647, %v49
    %vm84 = vcmp.lt.f32.partialorder %v83, 0.0004427343
    %v85 = vsel %vm84, %v82, %v79
    %v86 = vadd.f32 %v66, %v76
    %v87 = vadd.f32 %v67, %v85
    %v88 = vadd.f32 %v86, %v87
    %89 = vadd.xlane.f32.xlu0 %v88
    %v90 = vpop.xlane.xlu0 %89
    %vm91 = vcmask 7168
    %92 = vst.msk [vmem:[%s2] sm:$0xff] %vm91, %v90
    %v93 = vmul.f32 %v60, %v40
    %v94 = vmul.f32 %v61, %v41
    %v95 = vadd.f32 %v93, %v94
    %96 = vadd.xlane.f32.xlu0 %v95
    %v97 = vpop.xlane.xlu0 %96
    %v98 = vadd.f32 %v60, %v61
    %99 = vadd.xlane.f32.xlu0 %v98
    %v100 = vpop.xlane.xlu0 %99
    %v101 = vadd.f32 %v40, %v41
    %102 = vadd.xlane.f32.xlu0 %v101
    %v103 = vpop.xlane.xlu0 %102
    %v104 = vmul.f32 %v97, 2.0
    %v105 = vadd.f32 %v104, 1.0
    %v106 = vadd.f32 %v100, %v103
    %v107 = vadd.f32 %v106, 1.0
    %v108 = vrcp.pop %v107
    %v109 = vmul.f32 %v105, %v108
    %v110 = vsub.f32 1.0, %v109
    %111 = vst.msk [vmem:[%s3] sm:$0xff] %vm91, %v110
    // Predicated region
    $region18: #{tpu_custom_call.1} parent=1 // pred_check
      _
    $region19: #{tpu_custom_call.1} parent=1 // pred_check_branch
      %113 = sbr.rel (0) target = $region21
    $region20: #{tpu_custom_call.1} parent=1 // pred_region
      _
    $region21: #{tpu_custom_call.1} parent=1 // pred_fallthru
      _
    // Predicated region
    $region22: #{tpu_custom_call.1} parent=1 // pred_check
      _
    $region23: #{tpu_custom_call.1} parent=1 // pred_check_branch
      %115 = sbr.rel (0) target = $region25
    $region24: #{tpu_custom_call.1} parent=1 // pred_region
      _
    $region25: #{tpu_custom_call.1} parent=1 // pred_fallthru
      _
    // Predicated region
    $region26: #{tpu_custom_call.1} parent=1 // pred_check
      _
    $region27: #{tpu_custom_call.1} parent=1 // pred_check_branch
      %117 = sbr.rel (0) target = $region29
    $region28: #{tpu_custom_call.1} parent=1 // pred_region
      _
    $region29: #{tpu_custom_call.1} parent=1 // pred_fallthru
      _
    // Predicated region
    $region30: #{tpu_custom_call.1} parent=1 // pred_check
      _
    $region31: #{tpu_custom_call.1} parent=1 // pred_check_branch
      %119 = sbr.rel (0) target = $region33
    $region32: #{tpu_custom_call.1} parent=1 // pred_region
      _
    $region33: #{tpu_custom_call.1} parent=1 // pred_fallthru
      _
    %120 = vsyncpa [#allocation3], 1
    %121 = vsyncpa [#allocation5], 1

</llo_original>
